<compile_context>
chip_gen: v7x
topology: tpu7x:2x2x1
jax: 0.10.0
libtpu: 0.0.40
codegen_flags: <defaults>
</compile_context>

<pallas_src>
import jax
import jax.numpy as jnp
from jax.experimental import pallas as pl
from jax.experimental.pallas import tpu as pltpu

INPUT_DIM = 290
HIDDEN = [256, 128, 64, 32]   # last entry == path_dim
LABEL_DIM = 1
SLAB_W = 128                  # lane-dense combined output width (features + logit + pad)
MAX_TM = 256                  # batch tile: fills the MXU M dimension on v6e/v7x


def _round_up(n, m):
    return ((n + m - 1) // m) * m


def _silu(v):
    # sigmoid/exp go to the EUP slot (otherwise idle here) -> SiLU is effectively free.
    return v * jax.nn.sigmoid(v)


def pathnet_past_kernel(x_ref,
                        w1_ref, b1_ref,
                        w2_ref, b2_ref,
                        w3_ref, b3_ref,
                        w4_ref, b4_ref,
                        wc_ref, bc_ref,
                        slab_ref):
    """One batch tile: 4x (MXU matmul + bias + SiLU) + VPU classifier head."""
    h = x_ref[...]
    h = _silu(jnp.dot(h, w1_ref[...], preferred_element_type=jnp.float32) + b1_ref[...])
    h = _silu(jnp.dot(h, w2_ref[...], preferred_element_type=jnp.float32) + b2_ref[...])
    h = _silu(jnp.dot(h, w3_ref[...], preferred_element_type=jnp.float32) + b3_ref[...])
    h = _silu(jnp.dot(h, w4_ref[...], preferred_element_type=jnp.float32) + b4_ref[...])

    # Classifier (out_features = 1): broadcast-multiply + lane reduce on the
    # VPU/XLU instead of an N=1, K=32 MXU matmul.
    logit = jnp.sum(h * wc_ref[...], axis=-1, keepdims=True) + bc_ref[...]

    # Lane-dense combined output: features in lanes [0, 32), logit in lane 32,
    # zeros elsewhere.  One full-width (128-lane) store, one writeback DMA.
    tm = h.shape[0]
    pad = jnp.zeros((tm, SLAB_W - HIDDEN[3] - LABEL_DIM), jnp.float32)
    slab_ref[...] = jnp.concatenate([h, logit, pad], axis=-1)


@jax.jit
def pathnet_past_forward(x, params):
    """x: [B, INPUT_DIM] float32. params: dict of weights/biases. Returns (features, out)."""
    B = x.shape[0]
    # Batch tile: big enough to fill the MXU rows, but no larger than the
    # (8-aligned) padded batch so tiny batches stay tiny.
    tm = min(MAX_TM, _round_up(max(B, 8), 8))
    b_pad = _round_up(B, tm)
    if b_pad != B:
        x = jnp.pad(x, ((0, b_pad - B), (0, 0)))

    wc_row = params["wc"].reshape(1, HIDDEN[3])   # classifier weight as a [1, 32] row
    args = (x,
            params["w1"], params["b1"],
            params["w2"], params["b2"],
            params["w3"], params["b3"],
            params["w4"], params["b4"],
            wc_row, params["bc"])

    def pinned(shape):
        # Whole array, same block every grid step -> stays VMEM-resident.
        return pl.BlockSpec(shape, lambda i: (0, 0))

    in_specs = [pl.BlockSpec((tm, INPUT_DIM), lambda i: (i, 0))]   # batch-tiled input
    in_specs += [pinned(a.shape) for a in args[1:]]                # resident weights/biases

    slab = pl.pallas_call(
        pathnet_past_kernel,
        out_shape=jax.ShapeDtypeStruct((b_pad, SLAB_W), jnp.float32),
        grid=(b_pad // tm,),
        in_specs=in_specs,
        out_specs=pl.BlockSpec((tm, SLAB_W), lambda i: (i, 0)),
        compiler_params=pltpu.CompilerParams(
            dimension_semantics=("parallel",),     # v7x: shard batch tiles across both TCs
            vmem_limit_bytes=8 << 20),             # realistic footprint (<2 MiB actual)
    )(*args)

    features = slab[:B, :HIDDEN[3]]
    out = slab[:B, HIDDEN[3]:HIDDEN[3] + LABEL_DIM]
    return features, out


def init_params(key):
    """Deterministic init matching nn.Linear default: U(-1/sqrt(fan_in), 1/sqrt(fan_in))."""
    dims = [(INPUT_DIM, HIDDEN[0]),
            (HIDDEN[0], HIDDEN[1]),
            (HIDDEN[1], HIDDEN[2]),
            (HIDDEN[2], HIDDEN[3]),
            (HIDDEN[3], LABEL_DIM)]
    names = ["1", "2", "3", "4", "c"]
    params = {}
    for (fan_in, fan_out), name in zip(dims, names):
        key, kw, kb = jax.random.split(key, 3)
        bound = 1.0 / jnp.sqrt(jnp.float32(fan_in))
        params["w" + name] = jax.random.uniform(
            kw, (fan_in, fan_out), jnp.float32, minval=-bound, maxval=bound)
        # biases kept 2-D [1, out] so they broadcast over the batch axis in-kernel
        params["b" + name] = jax.random.uniform(
            kb, (1, fan_out), jnp.float32, minval=-bound, maxval=bound)
    return params


def pathnet_past_module(params, **kwargs):
    """Mirrors PATHNet_PaSt.forward: consumes pa1..pa4, uses pa3 (PaSt features)."""
    x_pa = [kwargs["pa%d" % i] for i in range(1, 5)]
    path_past_features = x_pa[2]
    features, out = pathnet_past_forward(path_past_features, params)
    # self.act is None (default) -> out returned as-is
    return features, out


def _ref_forward(x, p):
    h = x
    for n in ["1", "2", "3", "4"]:
        h = jax.nn.silu(h @ p["w" + n] + p["b" + n])
    return h, h @ p["wc"] + p["bc"]


if __name__ == "__main__":
    key = jax.random.PRNGKey(0)
    key, kp, k1, k2, k3, k4 = jax.random.split(key, 6)
    params = init_params(kp)

    # --- small batch (module-sized example) ---
    B = 8
    pa1 = jax.random.normal(k1, (B, INPUT_DIM), jnp.float32)
    pa2 = jax.random.normal(k2, (B, INPUT_DIM), jnp.float32)
    pa3 = jax.random.normal(k3, (B, INPUT_DIM), jnp.float32)
    pa4 = jax.random.normal(k4, (B, INPUT_DIM), jnp.float32)

    features, out = pathnet_past_module(params, pa1=pa1, pa2=pa2, pa3=pa3, pa4=pa4)
    jax.block_until_ready((features, out))

    ref_feat, ref_out = _ref_forward(pa3, params)
    assert features.shape == (B, HIDDEN[3]) and out.shape == (B, LABEL_DIM)
    assert jnp.allclose(features, ref_feat, atol=1e-5, rtol=1e-5)
    assert jnp.allclose(out, ref_out, atol=1e-5, rtol=1e-5)

    # --- larger, non-aligned batch: exercises padding + multi-step batch grid ---
    key, kb = jax.random.split(key)
    B2 = 300
    x_big = jax.random.normal(kb, (B2, INPUT_DIM), jnp.float32)
    feats2, out2 = pathnet_past_forward(x_big, params)
    jax.block_until_ready((feats2, out2))
    ref_feat2, ref_out2 = _ref_forward(x_big, params)
    assert feats2.shape == (B2, HIDDEN[3]) and out2.shape == (B2, LABEL_DIM)
    assert jnp.allclose(feats2, ref_feat2, atol=1e-5, rtol=1e-5)
    assert jnp.allclose(out2, ref_out2, atol=1e-5, rtol=1e-5)

    print("KERNEL_OK")
</pallas_src>

<mosaic_0001>
module attributes {stable_mosaic.version = 11 : i64} {
  func.func @pathnet_past_kernel(%arg0: i32, %arg1: memref<8x290xf32, #tpu.memory_space<vmem>>, %arg2: memref<290x256xf32, #tpu.memory_space<vmem>>, %arg3: memref<1x256xf32, #tpu.memory_space<vmem>>, %arg4: memref<256x128xf32, #tpu.memory_space<vmem>>, %arg5: memref<1x128xf32, #tpu.memory_space<vmem>>, %arg6: memref<128x64xf32, #tpu.memory_space<vmem>>, %arg7: memref<1x64xf32, #tpu.memory_space<vmem>>, %arg8: memref<64x32xf32, #tpu.memory_space<vmem>>, %arg9: memref<1x32xf32, #tpu.memory_space<vmem>>, %arg10: memref<1x32xf32, #tpu.memory_space<vmem>>, %arg11: memref<1x1xf32, #tpu.memory_space<vmem>>, %arg12: memref<8x128xf32, #tpu.memory_space<vmem>>) attributes {dimension_semantics = [#tpu.dimension_semantics<parallel>], iteration_bounds = array<i64: 1>, scalar_prefetch = 0 : i64, scratch_operands = 0 : i64, tpu.core_type = #tpu.core_type<tc>, window_params = [{transform_indices = @transform_0, window_bounds = array<i64: 8, 290>}, {pipeline_mode = #tpu.pipeline_mode<synchronous>, transform_indices = @transform_1, window_bounds = array<i64: 290, 256>}, {pipeline_mode = #tpu.pipeline_mode<synchronous>, transform_indices = @transform_2, window_bounds = array<i64: 1, 256>}, {pipeline_mode = #tpu.pipeline_mode<synchronous>, transform_indices = @transform_3, window_bounds = array<i64: 256, 128>}, {pipeline_mode = #tpu.pipeline_mode<synchronous>, transform_indices = @transform_4, window_bounds = array<i64: 1, 128>}, {pipeline_mode = #tpu.pipeline_mode<synchronous>, transform_indices = @transform_5, window_bounds = array<i64: 128, 64>}, {pipeline_mode = #tpu.pipeline_mode<synchronous>, transform_indices = @transform_6, window_bounds = array<i64: 1, 64>}, {pipeline_mode = #tpu.pipeline_mode<synchronous>, transform_indices = @transform_7, window_bounds = array<i64: 64, 32>}, {pipeline_mode = #tpu.pipeline_mode<synchronous>, transform_indices = @transform_8, window_bounds = array<i64: 1, 32>}, {pipeline_mode = #tpu.pipeline_mode<synchronous>, transform_indices = @transform_9, window_bounds = array<i64: 1, 32>}, {pipeline_mode = #tpu.pipeline_mode<synchronous>, transform_indices = @transform_10, window_bounds = array<i64: 1, 1>}, {transform_indices = @transform_11, window_bounds = array<i64: 8, 128>}]} {
    %c0 = arith.constant 0 : index
    %c0_0 = arith.constant 0 : index
    %0 = vector.load %arg1[%c0, %c0_0] : memref<8x290xf32, #tpu.memory_space<vmem>>, vector<8x290xf32>
    %c0_1 = arith.constant 0 : index
    %c0_2 = arith.constant 0 : index
    %1 = vector.load %arg2[%c0_1, %c0_2] : memref<290x256xf32, #tpu.memory_space<vmem>>, vector<290x256xf32>
    %cst = arith.constant dense<0.000000e+00> : vector<8x256xf32>
    %2 = tpu.matmul %0, %1, %cst {dimension_numbers = #tpu.dot_dimension_numbers<[1], [0], [0], [1], [0, 0, 1, 1], [], []>} : vector<8x290xf32>, vector<290x256xf32>, vector<8x256xf32> -> vector<8x256xf32>
    %c0_3 = arith.constant 0 : index
    %c0_4 = arith.constant 0 : index
    %3 = vector.load %arg3[%c0_3, %c0_4] : memref<1x256xf32, #tpu.memory_space<vmem>>, vector<1x256xf32>
    %4 = vector.broadcast %3 : vector<1x256xf32> to vector<8x256xf32>
    %5 = arith.addf %2, %4 : vector<8x256xf32>
    %6 = arith.negf %5 : vector<8x256xf32>
    %7 = math.exp %6 : vector<8x256xf32>
    %cst_5 = arith.constant 1.000000e+00 : f32
    %8 = vector.broadcast %cst_5 : f32 to vector<8x256xf32>
    %9 = arith.addf %8, %7 : vector<8x256xf32>
    %10 = arith.divf %8, %9 : vector<8x256xf32>
    %11 = arith.mulf %5, %10 : vector<8x256xf32>
    %c0_6 = arith.constant 0 : index
    %c0_7 = arith.constant 0 : index
    %12 = vector.load %arg4[%c0_6, %c0_7] : memref<256x128xf32, #tpu.memory_space<vmem>>, vector<256x128xf32>
    %cst_8 = arith.constant dense<0.000000e+00> : vector<8x128xf32>
    %13 = tpu.matmul %11, %12, %cst_8 {dimension_numbers = #tpu.dot_dimension_numbers<[1], [0], [0], [1], [0, 0, 1, 1], [], []>} : vector<8x256xf32>, vector<256x128xf32>, vector<8x128xf32> -> vector<8x128xf32>
    %c0_9 = arith.constant 0 : index
    %c0_10 = arith.constant 0 : index
    %14 = vector.load %arg5[%c0_9, %c0_10] : memref<1x128xf32, #tpu.memory_space<vmem>>, vector<1x128xf32>
    %15 = vector.broadcast %14 : vector<1x128xf32> to vector<8x128xf32>
    %16 = arith.addf %13, %15 : vector<8x128xf32>
    %17 = arith.negf %16 : vector<8x128xf32>
    %18 = math.exp %17 : vector<8x128xf32>
    %cst_11 = arith.constant 1.000000e+00 : f32
    %19 = vector.broadcast %cst_11 : f32 to vector<8x128xf32>
    %20 = arith.addf %19, %18 : vector<8x128xf32>
    %21 = arith.divf %19, %20 : vector<8x128xf32>
    %22 = arith.mulf %16, %21 : vector<8x128xf32>
    %c0_12 = arith.constant 0 : index
    %c0_13 = arith.constant 0 : index
    %23 = vector.load %arg6[%c0_12, %c0_13] : memref<128x64xf32, #tpu.memory_space<vmem>>, vector<128x64xf32>
    %cst_14 = arith.constant dense<0.000000e+00> : vector<8x64xf32>
    %24 = tpu.matmul %22, %23, %cst_14 {dimension_numbers = #tpu.dot_dimension_numbers<[1], [0], [0], [1], [0, 0, 1, 1], [], []>} : vector<8x128xf32>, vector<128x64xf32>, vector<8x64xf32> -> vector<8x64xf32>
    %c0_15 = arith.constant 0 : index
    %c0_16 = arith.constant 0 : index
    %25 = vector.load %arg7[%c0_15, %c0_16] : memref<1x64xf32, #tpu.memory_space<vmem>>, vector<1x64xf32>
    %26 = vector.broadcast %25 : vector<1x64xf32> to vector<8x64xf32>
    %27 = arith.addf %24, %26 : vector<8x64xf32>
    %28 = arith.negf %27 : vector<8x64xf32>
    %29 = math.exp %28 : vector<8x64xf32>
    %cst_17 = arith.constant 1.000000e+00 : f32
    %30 = vector.broadcast %cst_17 : f32 to vector<8x64xf32>
    %31 = arith.addf %30, %29 : vector<8x64xf32>
    %32 = arith.divf %30, %31 : vector<8x64xf32>
    %33 = arith.mulf %27, %32 : vector<8x64xf32>
    %c0_18 = arith.constant 0 : index
    %c0_19 = arith.constant 0 : index
    %34 = vector.load %arg8[%c0_18, %c0_19] : memref<64x32xf32, #tpu.memory_space<vmem>>, vector<64x32xf32>
    %cst_20 = arith.constant dense<0.000000e+00> : vector<8x32xf32>
    %35 = tpu.matmul %33, %34, %cst_20 {dimension_numbers = #tpu.dot_dimension_numbers<[1], [0], [0], [1], [0, 0, 1, 1], [], []>} : vector<8x64xf32>, vector<64x32xf32>, vector<8x32xf32> -> vector<8x32xf32>
    %c0_21 = arith.constant 0 : index
    %c0_22 = arith.constant 0 : index
    %36 = vector.load %arg9[%c0_21, %c0_22] : memref<1x32xf32, #tpu.memory_space<vmem>>, vector<1x32xf32>
    %37 = vector.broadcast %36 : vector<1x32xf32> to vector<8x32xf32>
    %38 = arith.addf %35, %37 : vector<8x32xf32>
    %39 = arith.negf %38 : vector<8x32xf32>
    %40 = math.exp %39 : vector<8x32xf32>
    %cst_23 = arith.constant 1.000000e+00 : f32
    %41 = vector.broadcast %cst_23 : f32 to vector<8x32xf32>
    %42 = arith.addf %41, %40 : vector<8x32xf32>
    %43 = arith.divf %41, %42 : vector<8x32xf32>
    %44 = arith.mulf %38, %43 : vector<8x32xf32>
    %c0_24 = arith.constant 0 : index
    %c0_25 = arith.constant 0 : index
    %45 = vector.load %arg10[%c0_24, %c0_25] : memref<1x32xf32, #tpu.memory_space<vmem>>, vector<1x32xf32>
    %46 = vector.broadcast %45 : vector<1x32xf32> to vector<8x32xf32>
    %47 = arith.mulf %44, %46 : vector<8x32xf32>
    %cst_26 = arith.constant dense<0.000000e+00> : vector<8xf32>
    %48 = vector.multi_reduction <add>, %47, %cst_26 [1] : vector<8x32xf32> to vector<8xf32>
    %49 = vector.shape_cast %48 : vector<8xf32> to vector<8x1xf32>
    %c0_27 = arith.constant 0 : index
    %c0_28 = arith.constant 0 : index
    %50 = vector.load %arg11[%c0_27, %c0_28] : memref<1x1xf32, #tpu.memory_space<vmem>>, vector<1x1xf32>
    %51 = vector.broadcast %50 : vector<1x1xf32> to vector<8x1xf32>
    %52 = arith.addf %49, %51 : vector<8x1xf32>
    %cst_29 = arith.constant 0.000000e+00 : f32
    %53 = vector.broadcast %cst_29 : f32 to vector<8x95xf32>
    %54 = tpu.concatenate %44, %52, %53 in 1 : vector<8x32xf32>, vector<8x1xf32>, vector<8x95xf32> -> vector<8x128xf32>
    %c0_30 = arith.constant 0 : index
    %c0_31 = arith.constant 0 : index
    %55 = vector.load %arg12[%c0_30, %c0_31] : memref<8x128xf32, #tpu.memory_space<vmem>>, vector<8x128xf32>
    tpu.vector_store %arg12[%c0_30, %c0_31], %54 {strides = array<i32>} : memref<8x128xf32, #tpu.memory_space<vmem>>, vector<8x128xf32>,
    return
  }
  func.func @transform_0(%arg0: i32) -> (i32, i32) {
    %c0_i32 = arith.constant 0 : i32
    %c0_i32_0 = arith.constant 0 : i32
    return %arg0, %c0_i32 : i32, i32
  }
  func.func @transform_1(%arg0: i32) -> (i32, i32) {
    %c0_i32 = arith.constant 0 : i32
    %c0_i32_0 = arith.constant 0 : i32
    %c0_i32_1 = arith.constant 0 : i32
    return %c0_i32, %c0_i32_0 : i32, i32
  }
  func.func @transform_2(%arg0: i32) -> (i32, i32) {
    %c0_i32 = arith.constant 0 : i32
    %c0_i32_0 = arith.constant 0 : i32
    %c0_i32_1 = arith.constant 0 : i32
    return %c0_i32, %c0_i32_0 : i32, i32
  }
  func.func @transform_3(%arg0: i32) -> (i32, i32) {
    %c0_i32 = arith.constant 0 : i32
    %c0_i32_0 = arith.constant 0 : i32
    %c0_i32_1 = arith.constant 0 : i32
    return %c0_i32, %c0_i32_0 : i32, i32
  }
  func.func @transform_4(%arg0: i32) -> (i32, i32) {
    %c0_i32 = arith.constant 0 : i32
    %c0_i32_0 = arith.constant 0 : i32
    %c0_i32_1 = arith.constant 0 : i32
    return %c0_i32, %c0_i32_0 : i32, i32
  }
  func.func @transform_5(%arg0: i32) -> (i32, i32) {
    %c0_i32 = arith.constant 0 : i32
    %c0_i32_0 = arith.constant 0 : i32
    %c0_i32_1 = arith.constant 0 : i32
    return %c0_i32, %c0_i32_0 : i32, i32
  }
  func.func @transform_6(%arg0: i32) -> (i32, i32) {
    %c0_i32 = arith.constant 0 : i32
    %c0_i32_0 = arith.constant 0 : i32
    %c0_i32_1 = arith.constant 0 : i32
    return %c0_i32, %c0_i32_0 : i32, i32
  }
  func.func @transform_7(%arg0: i32) -> (i32, i32) {
    %c0_i32 = arith.constant 0 : i32
    %c0_i32_0 = arith.constant 0 : i32
    %c0_i32_1 = arith.constant 0 : i32
    return %c0_i32, %c0_i32_0 : i32, i32
  }
  func.func @transform_8(%arg0: i32) -> (i32, i32) {
    %c0_i32 = arith.constant 0 : i32
    %c0_i32_0 = arith.constant 0 : i32
    %c0_i32_1 = arith.constant 0 : i32
    return %c0_i32, %c0_i32_0 : i32, i32
  }
  func.func @transform_9(%arg0: i32) -> (i32, i32) {
    %c0_i32 = arith.constant 0 : i32
    %c0_i32_0 = arith.constant 0 : i32
    %c0_i32_1 = arith.constant 0 : i32
    return %c0_i32, %c0_i32_0 : i32, i32
  }
  func.func @transform_10(%arg0: i32) -> (i32, i32) {
    %c0_i32 = arith.constant 0 : i32
    %c0_i32_0 = arith.constant 0 : i32
    %c0_i32_1 = arith.constant 0 : i32
    return %c0_i32, %c0_i32_0 : i32, i32
  }
  func.func @transform_11(%arg0: i32) -> (i32, i32) {
    %c0_i32 = arith.constant 0 : i32
    %c0_i32_0 = arith.constant 0 : i32
    return %arg0, %c0_i32 : i32, i32
  }
}

</mosaic_0001>

<llo_original>
// kernel: pathnet_past_forward.1
$region0: #{pathnet_past_forward.1}
  #allocation0 [shape = 'u32[]', space=smem, size = 0x4, offset = 0x4, fixed_abs, tag = 'smem constant byte address 0x4 - core index']
  #allocation1 [shape = 'u32[144,128]{1,0:T(1,128)}', space=vmem, size = 0x12000, scoped, tag = 'internal scratch']
  #allocation2 [shape = 'f32[1,1]{1,0:T(1,128)S(1)}', space=vmem, size = 0x200, scoped, tag = 'scoped memory for pathnet_past_forward.1']
  %s0 = inlined_call_operand.hbm [shape: f32[8,290], index: 0, kind: input, shape index: {}]
  %s1 = inlined_call_operand.hbm [shape: f32[290,256], index: 1, kind: input, shape index: {}]
  %s2 = inlined_call_operand.vmem [shape: f32[1,256], index: 2, kind: input, shape index: {}]
  %s3 = inlined_call_operand.vmem [shape: f32[256,128], index: 3, kind: input, shape index: {}]
  %s4 = inlined_call_operand.hbm [shape: f32[1,128], index: 4, kind: input, shape index: {}]
  %s5 = inlined_call_operand.vmem [shape: f32[128,64], index: 5, kind: input, shape index: {}]
  %s6 = inlined_call_operand.hbm [shape: f32[1,64], index: 6, kind: input, shape index: {}]
  %s7 = inlined_call_operand.vmem [shape: f32[64,32], index: 7, kind: input, shape index: {}]
  %s8 = inlined_call_operand.hbm [shape: f32[1,32], index: 8, kind: input, shape index: {}]
  %s9 = inlined_call_operand.vmem [shape: f32[1,32], index: 9, kind: input, shape index: {}]
  %s10 = inlined_call_operand.<no memory space> [shape: f32[1,1], index: 10, kind: input, shape index: {}]
  %s11 = inlined_call_operand.vmem [shape: f32[8,128], index: 11, kind: output, shape index: {}]
  %s12 = sld [smem:[#allocation0]]
  $region74: #{pathnet_past_forward.1} parent=0
    _
  %s14 = ssub.s32 1, %s12
  %s15 = scalar_select 0, %s14, %s12
  %v16 = vstv %s10
  %17 = vst [vmem:[#allocation2] sm:$0x1] %v16
  $region1: #{pathnet_past_forward.1} parent=0
    #allocation3 [shape = 'u8[12288]{0}', space=vmem, size = 0x3000, scoped, tag = 'input window, operand 0, single buffered']
    #allocation4 [shape = 's32[1]{0}', space=sflag, size = 0x4, scoped, tag = 'scoped memory for pathnet_past_forward.1']
    #allocation5 [shape = 'u8[303104]{0}', space=vmem, size = 0x4a000, scoped, tag = 'input window, operand 1, single buffered']
    #allocation6 [shape = 's32[1]{0}', space=sflag, size = 0x4, scoped, tag = 'scoped memory for pathnet_past_forward.1']
    #allocation7 [shape = 'u8[512]{0}', space=vmem, size = 0x400, scoped, tag = 'input window, operand 4, single buffered']
    #allocation8 [shape = 'u8[512]{0}', space=vmem, size = 0x400, scoped, tag = 'input window, operand 6, single buffered']
    #allocation9 [shape = 's32[1]{0}', space=sflag, size = 0x4, scoped, tag = 'scoped memory for pathnet_past_forward.1']
    #allocation10 [shape = 'u8[512]{0}', space=vmem, size = 0x400, scoped, tag = 'input window, operand 8, single buffered']
    %18 = vsyncpa [#allocation4], 0
    %19 = vsyncpa [#allocation6], 0
    %20 = vsyncpa [#allocation9], 0
    // Predicated region
    $region2: #{pathnet_past_forward.1} parent=1 // pred_check
      _
    $region3: #{pathnet_past_forward.1} parent=1 // pred_check_branch
      %22 = sbr.rel (0) target = $region5
    $region4: #{pathnet_past_forward.1} parent=1 // pred_region
      %s24 = ssub.s32 384, 384
      %25 = vsyncadd [#allocation4], %s24
      %s27 = sshll.u32 [#allocation3], 4
      %s28 = int_to_ptr.vmem [resolvable:$true] %s27
      %30 = dma.hbm_to_vmem [thread:$0]  %s0, 384, %s28, [#allocation4]
    $region5: #{pathnet_past_forward.1} parent=1 // pred_fallthru
      _
    // Predicated region
    $region6: #{pathnet_past_forward.1} parent=1 // pred_check
      _
    $region7: #{pathnet_past_forward.1} parent=1 // pred_check_branch
      %32 = sbr.rel (0) target = $region9
    $region8: #{pathnet_past_forward.1} parent=1 // pred_region
      %s34 = ssub.s32 9472, 9472
      %35 = vsyncadd [#allocation6], %s34
      %s36 = sshll.u32 [#allocation5], 4
      %s37 = int_to_ptr.vmem [resolvable:$true] %s36
      %42 = dma.hbm_to_vmem [thread:$0]  %s1, 9472, %s37, [#allocation6], 256, 256, 16
    $region9: #{pathnet_past_forward.1} parent=1 // pred_fallthru
      _
    // Predicated region
    $region10: #{pathnet_past_forward.1} parent=1 // pred_check
      _
    $region11: #{pathnet_past_forward.1} parent=1 // pred_check_branch
      %44 = sbr.rel (0) target = $region13
    $region12: #{pathnet_past_forward.1} parent=1 // pred_region
      _
    $region13: #{pathnet_past_forward.1} parent=1 // pred_fallthru
      _
    // Predicated region
    $region14: #{pathnet_past_forward.1} parent=1 // pred_check
      _
    $region15: #{pathnet_past_forward.1} parent=1 // pred_check_branch
      %46 = sbr.rel (0) target = $region17
    $region16: #{pathnet_past_forward.1} parent=1 // pred_region
      _
    $region17: #{pathnet_past_forward.1} parent=1 // pred_fallthru
      _
    // Predicated region
    $region18: #{pathnet_past_forward.1} parent=1 // pred_check
      _
    $region19: #{pathnet_past_forward.1} parent=1 // pred_check_branch
      %48 = sbr.rel (0) target = $region21
    $region20: #{pathnet_past_forward.1} parent=1 // pred_region
      %s50 = ssub.s32 16, 16
      %51 = vsyncadd [#allocation6], %s50
      %s53 = sshll.u32 [#allocation7], 4
      %s54 = int_to_ptr.vmem [resolvable:$true] %s53
      %56 = dma.hbm_to_vmem [thread:$0]  %s4, 16, %s54, [#allocation6]
    $region21: #{pathnet_past_forward.1} parent=1 // pred_fallthru
      _
    // Predicated region
    $region22: #{pathnet_past_forward.1} parent=1 // pred_check
      _
    $region23: #{pathnet_past_forward.1} parent=1 // pred_check_branch
      %58 = sbr.rel (0) target = $region25
    $region24: #{pathnet_past_forward.1} parent=1 // pred_region
      _
    $region25: #{pathnet_past_forward.1} parent=1 // pred_fallthru
      _
    // Predicated region
    $region26: #{pathnet_past_forward.1} parent=1 // pred_check
      _
    $region27: #{pathnet_past_forward.1} parent=1 // pred_check_branch
      %60 = sbr.rel (0) target = $region29
    $region28: #{pathnet_past_forward.1} parent=1 // pred_region
      %s62 = ssub.s32 16, 16
      %63 = vsyncadd [#allocation9], %s62
      %s65 = sshll.u32 [#allocation8], 4
      %s66 = int_to_ptr.vmem [resolvable:$true] %s65
      %68 = dma.hbm_to_vmem [thread:$0]  %s6, 16, %s66, [#allocation9]
    $region29: #{pathnet_past_forward.1} parent=1 // pred_fallthru
      _
    // Predicated region
    $region30: #{pathnet_past_forward.1} parent=1 // pred_check
      _
    $region31: #{pathnet_past_forward.1} parent=1 // pred_check_branch
      %70 = sbr.rel (0) target = $region33
    $region32: #{pathnet_past_forward.1} parent=1 // pred_region
      _
    $region33: #{pathnet_past_forward.1} parent=1 // pred_fallthru
      _
    // Predicated region
    $region34: #{pathnet_past_forward.1} parent=1 // pred_check
      _
    $region35: #{pathnet_past_forward.1} parent=1 // pred_check_branch
      %72 = sbr.rel (0) target = $region37
    $region36: #{pathnet_past_forward.1} parent=1 // pred_region
      %s74 = ssub.s32 16, 16
      %75 = vsyncadd [#allocation9], %s74
      %s77 = sshll.u32 [#allocation10], 4
      %s78 = int_to_ptr.vmem [resolvable:$true] %s77
      %80 = dma.hbm_to_vmem [thread:$0]  %s8, 16, %s78, [#allocation9]
    $region37: #{pathnet_past_forward.1} parent=1 // pred_fallthru
      _
    // Predicated region
    $region38: #{pathnet_past_forward.1} parent=1 // pred_check
      _
    $region39: #{pathnet_past_forward.1} parent=1 // pred_check_branch
      %82 = sbr.rel (0) target = $region41
    $region40: #{pathnet_past_forward.1} parent=1 // pred_region
      _
    $region41: #{pathnet_past_forward.1} parent=1 // pred_fallthru
      _
    // Predicated region
    $region42: #{pathnet_past_forward.1} parent=1 // pred_check
      _
    $region43: #{pathnet_past_forward.1} parent=1 // pred_check_branch
      %84 = sbr.rel (0) target = $region45
    $region44: #{pathnet_past_forward.1} parent=1 // pred_region
      _
    $region45: #{pathnet_past_forward.1} parent=1 // pred_fallthru
      _
    // Predicated region
    $region46: #{pathnet_past_forward.1} parent=1 // pred_check
      _
    $region47: #{pathnet_past_forward.1} parent=1 // pred_check_branch
      %86 = sbr.rel (0) target = $region49
    $region48: #{pathnet_past_forward.1} parent=1 // pred_region
      %87 = dma.done [#allocation4], 384
    $region49: #{pathnet_past_forward.1} parent=1 // pred_fallthru
      _
    // Predicated region
    $region50: #{pathnet_past_forward.1} parent=1 // pred_check
      _
    $region51: #{pathnet_past_forward.1} parent=1 // pred_check_branch
      %89 = sbr.rel (0) target = $region53
    $region52: #{pathnet_past_forward.1} parent=1 // pred_region
      %90 = dma.done [#allocation6], 9472
    $region53: #{pathnet_past_forward.1} parent=1 // pred_fallthru
      _
    // Predicated region
    $region54: #{pathnet_past_forward.1} parent=1 // pred_check
      _
    $region55: #{pathnet_past_forward.1} parent=1 // pred_check_branch
      %92 = sbr.rel (0) target = $region57
    $region56: #{pathnet_past_forward.1} parent=1 // pred_region
      %93 = dma.done [#allocation6], 16
    $region57: #{pathnet_past_forward.1} parent=1 // pred_fallthru
      _
    // Predicated region
    $region58: #{pathnet_past_forward.1} parent=1 // pred_check
      _
    $region59: #{pathnet_past_forward.1} parent=1 // pred_check_branch
      %95 = sbr.rel (0) target = $region61
    $region60: #{pathnet_past_forward.1} parent=1 // pred_region
      %96 = dma.done [#allocation9], 16
    $region61: #{pathnet_past_forward.1} parent=1 // pred_fallthru
      _
    // Predicated region
    $region62: #{pathnet_past_forward.1} parent=1 // pred_check
      _
    $region63: #{pathnet_past_forward.1} parent=1 // pred_check_branch
      %98 = sbr.rel (0) target = $region65
    $region64: #{pathnet_past_forward.1} parent=1 // pred_region
      %99 = dma.done [#allocation9], 16
    $region65: #{pathnet_past_forward.1} parent=1 // pred_fallthru
      _
    %v100 = vld [vmem:[#allocation3] sm:$0xff]
    %v101 = vld [vmem:[#allocation3 + $0x8] sm:$0xff]
    %v102 = vld [vmem:[#allocation3 + $0x10] sm:$0xff]
    %v103 = vld [vmem:[#allocation5] sm:$0xff]
    %v104 = vld [vmem:[#allocation5 + $0x8] sm:$0xff]
    %v105 = vld [vmem:[#allocation5 + $0x10] sm:$0xff]
    %v106 = vld [vmem:[#allocation5 + $0x18] sm:$0xff]
    %v107 = vld [vmem:[#allocation5 + $0x20] sm:$0xff]
    %v108 = vld [vmem:[#allocation5 + $0x28] sm:$0xff]
    %v109 = vld [vmem:[#allocation5 + $0x30] sm:$0xff]
    %v110 = vld [vmem:[#allocation5 + $0x38] sm:$0xff]
    %v111 = vld [vmem:[#allocation5 + $0x40] sm:$0xff]
    %v112 = vld [vmem:[#allocation5 + $0x48] sm:$0xff]
    %v113 = vld [vmem:[#allocation5 + $0x50] sm:$0xff]
    %v114 = vld [vmem:[#allocation5 + $0x58] sm:$0xff]
    %v115 = vld [vmem:[#allocation5 + $0x60] sm:$0xff]
    %v116 = vld [vmem:[#allocation5 + $0x68] sm:$0xff]
    %v117 = vld [vmem:[#allocation5 + $0x70] sm:$0xff]
    %v118 = vld [vmem:[#allocation5 + $0x78] sm:$0xff]
    %v119 = vld [vmem:[#allocation5 + $0x80] sm:$0xff]
    %v120 = vld [vmem:[#allocation5 + $0x88] sm:$0xff]
    %v121 = vld [vmem:[#allocation5 + $0x90] sm:$0xff]
    %v122 = vld [vmem:[#allocation5 + $0x98] sm:$0xff]
    %v123 = vld [vmem:[#allocation5 + $0xa0] sm:$0xff]
    %v124 = vld [vmem:[#allocation5 + $0xa8] sm:$0xff]
    %v125 = vld [vmem:[#allocation5 + $0xb0] sm:$0xff]
    %v126 = vld [vmem:[#allocation5 + $0xb8] sm:$0xff]
    %v127 = vld [vmem:[#allocation5 + $0xc0] sm:$0xff]
    %v128 = vld [vmem:[#allocation5 + $0xc8] sm:$0xff]
    %v129 = vld [vmem:[#allocation5 + $0xd0] sm:$0xff]
    %v130 = vld [vmem:[#allocation5 + $0xd8] sm:$0xff]
    %v131 = vld [vmem:[#allocation5 + $0xe0] sm:$0xff]
    %v132 = vld [vmem:[#allocation5 + $0xe8] sm:$0xff]
    %v133 = vld [vmem:[#allocation5 + $0xf0] sm:$0xff]
    %v134 = vld [vmem:[#allocation5 + $0xf8] sm:$0xff]
    %v135 = vld [vmem:[#allocation5 + $0x100] sm:$0xff]
    %v136 = vld [vmem:[#allocation5 + $0x108] sm:$0xff]
    %v137 = vld [vmem:[#allocation5 + $0x110] sm:$0xff]
    %v138 = vld [vmem:[#allocation5 + $0x118] sm:$0xff]
    %v139 = vld [vmem:[#allocation5 + $0x120] sm:$0xff]
    %v140 = vld [vmem:[#allocation5 + $0x128] sm:$0xff]
    %v141 = vld [vmem:[#allocation5 + $0x130] sm:$0xff]
    %v142 = vld [vmem:[#allocation5 + $0x138] sm:$0xff]
    %v143 = vld [vmem:[#allocation5 + $0x140] sm:$0xff]
    %v144 = vld [vmem:[#allocation5 + $0x148] sm:$0xff]
    %v145 = vld [vmem:[#allocation5 + $0x150] sm:$0xff]
    %v146 = vld [vmem:[#allocation5 + $0x158] sm:$0xff]
    %v147 = vld [vmem:[#allocation5 + $0x160] sm:$0xff]
    %v148 = vld [vmem:[#allocation5 + $0x168] sm:$0xff]
    %v149 = vld [vmem:[#allocation5 + $0x170] sm:$0xff]
    %v150 = vld [vmem:[#allocation5 + $0x178] sm:$0xff]
    %v151 = vld [vmem:[#allocation5 + $0x180] sm:$0xff]
    %v152 = vld [vmem:[#allocation5 + $0x188] sm:$0xff]
    %v153 = vld [vmem:[#allocation5 + $0x190] sm:$0xff]
    %v154 = vld [vmem:[#allocation5 + $0x198] sm:$0xff]
    %v155 = vld [vmem:[#allocation5 + $0x1a0] sm:$0xff]
    %v156 = vld [vmem:[#allocation5 + $0x1a8] sm:$0xff]
    %v157 = vld [vmem:[#allocation5 + $0x1b0] sm:$0xff]
    %v158 = vld [vmem:[#allocation5 + $0x1b8] sm:$0xff]
    %v159 = vld [vmem:[#allocation5 + $0x1c0] sm:$0xff]
    %v160 = vld [vmem:[#allocation5 + $0x1c8] sm:$0xff]
    %v161 = vld [vmem:[#allocation5 + $0x1d0] sm:$0xff]
    %v162 = vld [vmem:[#allocation5 + $0x1d8] sm:$0xff]
    %v163 = vld [vmem:[#allocation5 + $0x1e0] sm:$0xff]
    %v164 = vld [vmem:[#allocation5 + $0x1e8] sm:$0xff]
    %v165 = vld [vmem:[#allocation5 + $0x1f0] sm:$0xff]
    %v166 = vld [vmem:[#allocation5 + $0x1f8] sm:$0xff]
    %v167 = vld [vmem:[#allocation5 + $0x200] sm:$0xff]
    %v168 = vld [vmem:[#allocation5 + $0x208] sm:$0xff]
    %v169 = vld [vmem:[#allocation5 + $0x210] sm:$0xff]
    %v170 = vld [vmem:[#allocation5 + $0x218] sm:$0xff]
    %v171 = vld [vmem:[#allocation5 + $0x220] sm:$0xff]
    %v172 = vld [vmem:[#allocation5 + $0x228] sm:$0xff]
    %v173 = vld [vmem:[#allocation5 + $0x230] sm:$0xff]
    %v174 = vld [vmem:[#allocation5 + $0x238] sm:$0xff]
    %v175 = vld [vmem:[#allocation5 + $0x240] sm:$0x3]
    %v176 = vld [vmem:[#allocation5 + $0x248] sm:$0x3]
    %v177 = vld [vmem:[%s2] sm:$0x3]
    %v179 = vlaneseq
    %v180 = vshrl.u32 %v179, 7
    %v181 = vsub.s32 0, %v180
    %v182 = vrot.slane %v177, %v181
    %v183 = vlaneseq
    %v184 = vshrl.u32 %v183, 7
    %v185 = vsub.s32 1, %v184
    %v186 = vrot.slane %v177, %v185
    %vm189 = vcmask 277504
    %v191 = vsel %vm189, %v102, 0
    %vm193 = vcmask 1041408
    %v195 = vsel %vm193, %v175, 0
    %v198 = vsel %vm193, %v176, 0
    %200 = vmatprep.subr.mxu0 %v104
    %201 = vmatpush1.msra.mxu0 %v103
    %202 = vmatprep.subr.mxu0 %v106
    %203 = vmatpush1.msra.mxu0 %v105
    %204 = vmatprep.subr.mxu0 %v108
    %205 = vmatpush1.msra.mxu0 %v107
    %206 = vmatprep.subr.mxu0 %v110
    %207 = vmatpush1.msra.mxu0 %v109
    %208 = vmatprep.subr.mxu0 %v112
    %209 = vmatpush1.msra.mxu0 %v111
    %210 = vmatprep.subr.mxu0 %v114
    %211 = vmatpush1.msra.mxu0 %v113
    %212 = vmatprep.subr.mxu0 %v116
    %213 = vmatpush1.msra.mxu0 %v115
    %214 = vmatprep.subr.mxu0 %v118
    %215 = vmatpush1.msra.mxu0 %v117
    %216 = vmatprep.subr.mxu0 %v120
    %217 = vmatpush1.msra.mxu0 %v119
    %218 = vmatprep.subr.mxu0 %v122
    %219 = vmatpush1.msra.mxu0 %v121
    %220 = vmatprep.subr.mxu0 %v124
    %221 = vmatpush1.msra.mxu0 %v123
    %222 = vmatprep.subr.mxu0 %v126
    %223 = vmatpush1.msra.mxu0 %v125
    %224 = vmatprep.subr.mxu0 %v128
    %225 = vmatpush1.msra.mxu0 %v127
    %226 = vmatprep.subr.mxu0 %v130
    %227 = vmatpush1.msra.mxu0 %v129
    %228 = vmatprep.subr.mxu0 %v132
    %229 = vmatpush1.msra.mxu0 %v131
    %230 = vmatprep.subr.mxu0 %v134
    %231 = vmatpush1.msra.mxu0 %v133
    %232 = vmatprep.subr.mxu0 %v136
    %233 = vmatpush1.msra.mxu0 %v135
    %234 = vmatprep.subr.mxu0 %v138
    %235 = vmatpush1.msra.mxu0 %v137
    %236 = vmatprep.subr.mxu0 %v140
    %237 = vmatpush1.msra.mxu0 %v139
    %238 = vmatprep.subr.mxu0 %v142
    %239 = vmatpush1.msra.mxu0 %v141
    %240 = vmatprep.subr.mxu0 %v144
    %241 = vmatpush1.msra.mxu0 %v143
    %242 = vmatprep.subr.mxu0 %v146
    %243 = vmatpush1.msra.mxu0 %v145
    %244 = vmatprep.subr.mxu0 %v148
    %245 = vmatpush1.msra.mxu0 %v147
    %246 = vmatprep.subr.mxu0 %v150
    %247 = vmatpush1.msra.mxu0 %v149
    %248 = vmatprep.subr.mxu0 %v152
    %249 = vmatpush1.msra.mxu0 %v151
    %250 = vmatprep.subr.mxu0 %v154
    %251 = vmatpush1.msra.mxu0 %v153
    %252 = vmatprep.subr.mxu0 %v156
    %253 = vmatpush1.msra.mxu0 %v155
    %254 = vmatprep.subr.mxu0 %v158
    %255 = vmatpush1.msra.mxu0 %v157
    %256 = vmatprep.subr.mxu0 %v160
    %257 = vmatpush1.msra.mxu0 %v159
    %258 = vmatprep.subr.mxu0 %v162
    %259 = vmatpush1.msra.mxu0 %v161
    %260 = vmatprep.subr.mxu0 %v164
    %261 = vmatpush1.msra.mxu0 %v163
    %262 = vmatprep.subr.mxu0 %v166
    %263 = vmatpush1.msra.mxu0 %v165
    %264 = vmatprep.mubr.f32.mxu0 %v101
    %265 = vmatmul.mubr.f32.gmra.mrb[0].mxu0 %v100
    %v266 = vpop.f32.mrb[0].mxu0
    %v267 = vadd.f32 %v182, %v266
    %v268 = vpop.f32.mrb[0].mxu0
    %v269 = vadd.f32 %v186, %v268
    %270 = vdwg.mxu0
    %271 = vmatprep.subr.mxu0 %v168
    %272 = vmatpush1.msra.mxu0 %v167
    %273 = vmatprep.subr.mxu0 %v170
    %274 = vmatpush1.msra.mxu0 %v169
    %275 = vmatprep.subr.mxu0 %v172
    %276 = vmatpush1.msra.mxu0 %v171
    %277 = vmatprep.subr.mxu0 %v174
    %278 = vmatpush1.msra.mxu0 %v173
    %279 = vmatprep.subr.mxu0 %v198
    %280 = vmatpush1.msra.mxu0 %v195
    %281 = vmatprep.subr.mxu0 0.0
    %282 = vmatpush1.msra.mxu0 0.0
    %283 = vmatprep.subr.mxu0 0.0
    %284 = vmatpush1.msra.mxu0 0.0
    %285 = vmatprep.subr.mxu0 0.0
    %286 = vmatpush1.msra.mxu0 0.0
    %287 = vmatprep.subr.mxu0 0.0
    %288 = vmatpush1.msra.mxu0 0.0
    %289 = vmatprep.subr.mxu0 0.0
    %290 = vmatpush1.msra.mxu0 0.0
    %291 = vmatprep.subr.mxu0 0.0
    %292 = vmatpush1.msra.mxu0 0.0
    %293 = vmatprep.subr.mxu0 0.0
    %294 = vmatpush1.msra.mxu0 0.0
    %295 = vmatprep.subr.mxu0 0.0
    %296 = vmatpush1.msra.mxu0 0.0
    %297 = vmatprep.subr.mxu0 0.0
    %298 = vmatpush1.msra.mxu0 0.0
    %299 = vmatprep.subr.mxu0 0.0
    %300 = vmatpush1.msra.mxu0 0.0
    %301 = vmatprep.subr.mxu0 0.0
    %302 = vmatpush1.msra.mxu0 0.0
    %303 = vmatprep.subr.mxu0 0.0
    %304 = vmatpush1.msra.mxu0 0.0
    %305 = vmatprep.subr.mxu0 0.0
    %306 = vmatpush1.msra.mxu0 0.0
    %307 = vmatprep.subr.mxu0 0.0
    %308 = vmatpush1.msra.mxu0 0.0
    %309 = vmatprep.subr.mxu0 0.0
    %310 = vmatpush1.msra.mxu0 0.0
    %311 = vmatprep.subr.mxu0 0.0
    %312 = vmatpush1.msra.mxu0 0.0
    %313 = vmatprep.subr.mxu0 0.0
    %314 = vmatpush1.msra.mxu0 0.0
    %315 = vmatprep.subr.mxu0 0.0
    %316 = vmatpush1.msra.mxu0 0.0
    %317 = vmatprep.subr.mxu0 0.0
    %318 = vmatpush1.msra.mxu0 0.0
    %319 = vmatprep.subr.mxu0 0.0
    %320 = vmatpush1.msra.mxu0 0.0
    %321 = vmatprep.subr.mxu0 0.0
    %322 = vmatpush1.msra.mxu0 0.0
    %323 = vmatprep.subr.mxu0 0.0
    %324 = vmatpush1.msra.mxu0 0.0
    %325 = vmatprep.subr.mxu0 0.0
    %326 = vmatpush1.msra.mxu0 0.0
    %327 = vmatprep.subr.mxu0 0.0
    %328 = vmatpush1.msra.mxu0 0.0
    %329 = vmatprep.subr.mxu0 0.0
    %330 = vmatpush1.msra.mxu0 0.0
    %331 = vmatprep.subr.mxu0 0.0
    %332 = vmatpush1.msra.mxu0 0.0
    %333 = vmatprep.subr.mxu0 0.0
    %334 = vmatpush1.msra.mxu0 0.0
    %335 = vmatprep.mubr.f32.mxu0 0.0
    %336 = vmatmul.mubr.f32.gmra.mrb[0].mxu0 %v191
    %v337 = vpop.f32.mrb[0].mxu0
    %v338 = vadd.f32 %v267, %v337
    %v339 = vpop.f32.mrb[0].mxu0
    %v340 = vadd.f32 %v269, %v339
    %341 = vdwg.mxu0
    %v342 = vxor.u32 %v338, 2147483648
    %v343 = vxor.u32 %v340, 2147483648
    %v344 = vmul.f32 %v342, 1.442695
    %v345 = vpow.pop %v344
    %v346 = vmul.f32 %v343, 1.442695
    %v347 = vpow.pop %v346
    %v348 = vadd.f32 %v345, 1.0
    %v349 = vadd.f32 %v347, 1.0
    %v350 = vrcp.pop %v348
    %v351 = vmul.f32 1.0, %v350
    %v352 = vrcp.pop %v349
    %v353 = vmul.f32 1.0, %v352
    %v354 = vmul.f32 %v338, %v351
    %v355 = vmul.f32 %v340, %v353
    %v356 = vld [vmem:[%s3] sm:$0xff]
    %v357 = vld [vmem:[%s3 + $0x8] sm:$0xff]
    %v358 = vld [vmem:[%s3 + $0x10] sm:$0xff]
    %v359 = vld [vmem:[%s3 + $0x18] sm:$0xff]
    %v360 = vld [vmem:[%s3 + $0x20] sm:$0xff]
    %v361 = vld [vmem:[%s3 + $0x28] sm:$0xff]
    %v362 = vld [vmem:[%s3 + $0x30] sm:$0xff]
    %v363 = vld [vmem:[%s3 + $0x38] sm:$0xff]
    %v364 = vld [vmem:[%s3 + $0x40] sm:$0xff]
    %v365 = vld [vmem:[%s3 + $0x48] sm:$0xff]
    %v366 = vld [vmem:[%s3 + $0x50] sm:$0xff]
    %v367 = vld [vmem:[%s3 + $0x58] sm:$0xff]
    %v368 = vld [vmem:[%s3 + $0x60] sm:$0xff]
    %v369 = vld [vmem:[%s3 + $0x68] sm:$0xff]
    %v370 = vld [vmem:[%s3 + $0x70] sm:$0xff]
    %v371 = vld [vmem:[%s3 + $0x78] sm:$0xff]
    %v372 = vld [vmem:[%s3 + $0x80] sm:$0xff]
    %v373 = vld [vmem:[%s3 + $0x88] sm:$0xff]
    %v374 = vld [vmem:[%s3 + $0x90] sm:$0xff]
    %v375 = vld [vmem:[%s3 + $0x98] sm:$0xff]
    %v376 = vld [vmem:[%s3 + $0xa0] sm:$0xff]
    %v377 = vld [vmem:[%s3 + $0xa8] sm:$0xff]
    %v378 = vld [vmem:[%s3 + $0xb0] sm:$0xff]
    %v379 = vld [vmem:[%s3 + $0xb8] sm:$0xff]
    %v380 = vld [vmem:[%s3 + $0xc0] sm:$0xff]
    %v381 = vld [vmem:[%s3 + $0xc8] sm:$0xff]
    %v382 = vld [vmem:[%s3 + $0xd0] sm:$0xff]
    %v383 = vld [vmem:[%s3 + $0xd8] sm:$0xff]
    %v384 = vld [vmem:[%s3 + $0xe0] sm:$0xff]
    %v385 = vld [vmem:[%s3 + $0xe8] sm:$0xff]
    %v386 = vld [vmem:[%s3 + $0xf0] sm:$0xff]
    %v387 = vld [vmem:[%s3 + $0xf8] sm:$0xff]
    %v388 = vld [vmem:[#allocation7] sm:$0x1]
    %v390 = vlaneseq
    %v391 = vshrl.u32 %v390, 7
    %v392 = vsub.s32 0, %v391
    %v393 = vrot.slane %v388, %v392
    %395 = vmatprep.subr.mxu0 0.0
    %396 = vmatpush1.msra.mxu0 %v356
    %397 = vmatprep.subr.mxu0 0.0
    %398 = vmatpush1.msra.mxu0 %v357
    %399 = vmatprep.subr.mxu0 0.0
    %400 = vmatpush1.msra.mxu0 %v358
    %401 = vmatprep.subr.mxu0 0.0
    %402 = vmatpush1.msra.mxu0 %v359
    %403 = vmatprep.subr.mxu0 0.0
    %404 = vmatpush1.msra.mxu0 %v360
    %405 = vmatprep.subr.mxu0 0.0
    %406 = vmatpush1.msra.mxu0 %v361
    %407 = vmatprep.subr.mxu0 0.0
    %408 = vmatpush1.msra.mxu0 %v362
    %409 = vmatprep.subr.mxu0 0.0
    %410 = vmatpush1.msra.mxu0 %v363
    %411 = vmatprep.subr.mxu0 0.0
    %412 = vmatpush1.msra.mxu0 %v364
    %413 = vmatprep.subr.mxu0 0.0
    %414 = vmatpush1.msra.mxu0 %v365
    %415 = vmatprep.subr.mxu0 0.0
    %416 = vmatpush1.msra.mxu0 %v366
    %417 = vmatprep.subr.mxu0 0.0
    %418 = vmatpush1.msra.mxu0 %v367
    %419 = vmatprep.subr.mxu0 0.0
    %420 = vmatpush1.msra.mxu0 %v368
    %421 = vmatprep.subr.mxu0 0.0
    %422 = vmatpush1.msra.mxu0 %v369
    %423 = vmatprep.subr.mxu0 0.0
    %424 = vmatpush1.msra.mxu0 %v370
    %425 = vmatprep.subr.mxu0 0.0
    %426 = vmatpush1.msra.mxu0 %v371
    %427 = vmatprep.subr.mxu0 0.0
    %428 = vmatpush1.msra.mxu0 %v372
    %429 = vmatprep.subr.mxu0 0.0
    %430 = vmatpush1.msra.mxu0 %v373
    %431 = vmatprep.subr.mxu0 0.0
    %432 = vmatpush1.msra.mxu0 %v374
    %433 = vmatprep.subr.mxu0 0.0
    %434 = vmatpush1.msra.mxu0 %v375
    %435 = vmatprep.subr.mxu0 0.0
    %436 = vmatpush1.msra.mxu0 %v376
    %437 = vmatprep.subr.mxu0 0.0
    %438 = vmatpush1.msra.mxu0 %v377
    %439 = vmatprep.subr.mxu0 0.0
    %440 = vmatpush1.msra.mxu0 %v378
    %441 = vmatprep.subr.mxu0 0.0
    %442 = vmatpush1.msra.mxu0 %v379
    %443 = vmatprep.subr.mxu0 0.0
    %444 = vmatpush1.msra.mxu0 %v380
    %445 = vmatprep.subr.mxu0 0.0
    %446 = vmatpush1.msra.mxu0 %v381
    %447 = vmatprep.subr.mxu0 0.0
    %448 = vmatpush1.msra.mxu0 %v382
    %449 = vmatprep.subr.mxu0 0.0
    %450 = vmatpush1.msra.mxu0 %v383
    %451 = vmatprep.subr.mxu0 0.0
    %452 = vmatpush1.msra.mxu0 %v384
    %453 = vmatprep.subr.mxu0 0.0
    %454 = vmatpush1.msra.mxu0 %v385
    %455 = vmatprep.subr.mxu0 0.0
    %456 = vmatpush1.msra.mxu0 %v386
    %457 = vmatprep.subr.mxu0 0.0
    %458 = vmatpush1.msra.mxu0 %v387
    %459 = vmatprep.mubr.f32.mxu0 %v355
    %460 = vmatmul.mubr.f32.gmra.mrb[0].mxu0 %v354
    %v461 = vpop.f32.mrb[0].mxu0
    %v462 = vadd.f32 %v393, %v461
    %v463 = vpop.f32.mrb[0].mxu0
    %464 = vdwg.mxu0
    %v465 = vxor.u32 %v462, 2147483648
    %v466 = vmul.f32 %v465, 1.442695
    %v467 = vpow.pop %v466
    %v468 = vadd.f32 %v467, 1.0
    %v469 = vrcp.pop %v468
    %v470 = vmul.f32 1.0, %v469
    %v471 = vmul.f32 %v462, %v470
    %v472 = vld [vmem:[%s5] sm:$0xff]
    %v473 = vld [vmem:[%s5 + $0x8] sm:$0xff]
    %v474 = vld [vmem:[%s5 + $0x10] sm:$0xff]
    %v475 = vld [vmem:[%s5 + $0x18] sm:$0xff]
    %v476 = vld [vmem:[%s5 + $0x20] sm:$0xff]
    %v477 = vld [vmem:[%s5 + $0x28] sm:$0xff]
    %v478 = vld [vmem:[%s5 + $0x30] sm:$0xff]
    %v479 = vld [vmem:[%s5 + $0x38] sm:$0xff]
    %v480 = vld [vmem:[%s5 + $0x40] sm:$0xff]
    %v481 = vld [vmem:[%s5 + $0x48] sm:$0xff]
    %v482 = vld [vmem:[%s5 + $0x50] sm:$0xff]
    %v483 = vld [vmem:[%s5 + $0x58] sm:$0xff]
    %v484 = vld [vmem:[%s5 + $0x60] sm:$0xff]
    %v485 = vld [vmem:[%s5 + $0x68] sm:$0xff]
    %v486 = vld [vmem:[%s5 + $0x70] sm:$0xff]
    %v487 = vld [vmem:[%s5 + $0x78] sm:$0xff]
    %v488 = vld [vmem:[#allocation8] sm:$0x1]
    %v490 = vlaneseq
    %v491 = vshrl.u32 %v490, 7
    %v492 = vsub.s32 0, %v491
    %v493 = vrot.slane %v488, %v492
    %495 = vmatprep.subr.mxu0 0.0
    %496 = vmatpush1.msra.mxu0 %v472
    %497 = vmatprep.subr.mxu0 0.0
    %498 = vmatpush1.msra.mxu0 %v473
    %499 = vmatprep.subr.mxu0 0.0
    %500 = vmatpush1.msra.mxu0 %v474
    %501 = vmatprep.subr.mxu0 0.0
    %502 = vmatpush1.msra.mxu0 %v475
    %503 = vmatprep.subr.mxu0 0.0
    %504 = vmatpush1.msra.mxu0 %v476
    %505 = vmatprep.subr.mxu0 0.0
    %506 = vmatpush1.msra.mxu0 %v477
    %507 = vmatprep.subr.mxu0 0.0
    %508 = vmatpush1.msra.mxu0 %v478
    %509 = vmatprep.subr.mxu0 0.0
    %510 = vmatpush1.msra.mxu0 %v479
    %511 = vmatprep.subr.mxu0 0.0
    %512 = vmatpush1.msra.mxu0 %v480
    %513 = vmatprep.subr.mxu0 0.0
    %514 = vmatpush1.msra.mxu0 %v481
    %515 = vmatprep.subr.mxu0 0.0
    %516 = vmatpush1.msra.mxu0 %v482
    %517 = vmatprep.subr.mxu0 0.0
    %518 = vmatpush1.msra.mxu0 %v483
    %519 = vmatprep.subr.mxu0 0.0
    %520 = vmatpush1.msra.mxu0 %v484
    %521 = vmatprep.subr.mxu0 0.0
    %522 = vmatpush1.msra.mxu0 %v485
    %523 = vmatprep.subr.mxu0 0.0
    %524 = vmatpush1.msra.mxu0 %v486
    %525 = vmatprep.subr.mxu0 0.0
    %526 = vmatpush1.msra.mxu0 %v487
    %527 = vmatprep.subr.mxu0 0.0
    %528 = vmatpush1.msra.mxu0 0.0
    %529 = vmatprep.subr.mxu0 0.0
    %530 = vmatpush1.msra.mxu0 0.0
    %531 = vmatprep.subr.mxu0 0.0
    %532 = vmatpush1.msra.mxu0 0.0
    %533 = vmatprep.subr.mxu0 0.0
    %534 = vmatpush1.msra.mxu0 0.0
    %535 = vmatprep.subr.mxu0 0.0
    %536 = vmatpush1.msra.mxu0 0.0
    %537 = vmatprep.subr.mxu0 0.0
    %538 = vmatpush1.msra.mxu0 0.0
    %539 = vmatprep.subr.mxu0 0.0
    %540 = vmatpush1.msra.mxu0 0.0
    %541 = vmatprep.subr.mxu0 0.0
    %542 = vmatpush1.msra.mxu0 0.0
    %543 = vmatprep.subr.mxu0 0.0
    %544 = vmatpush1.msra.mxu0 0.0
    %545 = vmatprep.subr.mxu0 0.0
    %546 = vmatpush1.msra.mxu0 0.0
    %547 = vmatprep.subr.mxu0 0.0
    %548 = vmatpush1.msra.mxu0 0.0
    %549 = vmatprep.subr.mxu0 0.0
    %550 = vmatpush1.msra.mxu0 0.0
    %551 = vmatprep.subr.mxu0 0.0
    %552 = vmatpush1.msra.mxu0 0.0
    %553 = vmatprep.subr.mxu0 0.0
    %554 = vmatpush1.msra.mxu0 0.0
    %555 = vmatprep.subr.mxu0 0.0
    %556 = vmatpush1.msra.mxu0 0.0
    %557 = vmatprep.subr.mxu0 0.0
    %558 = vmatpush1.msra.mxu0 0.0
    %559 = vmatprep.mubr.f32.mxu0 0.0
    %560 = vmatmul.mubr.f32.gmra.mrb[0].mxu0 %v471
    %v561 = vpop.f32.mrb[0].mxu0
    %v562 = vadd.f32 %v493, %v561
    %v563 = vpop.f32.mrb[0].mxu0
    %564 = vdwg.mxu0
    %v565 = vxor.u32 %v562, 2147483648
    %v566 = vmul.f32 %v565, 1.442695
    %v567 = vpow.pop %v566
    %v568 = vadd.f32 %v567, 1.0
    %v569 = vrcp.pop %v568
    %v570 = vmul.f32 1.0, %v569
    %v571 = vmul.f32 %v562, %v570
    %v572 = vld [vmem:[%s7] sm:$0xff]
    %v573 = vld [vmem:[%s7 + $0x8] sm:$0xff]
    %v574 = vld [vmem:[%s7 + $0x10] sm:$0xff]
    %v575 = vld [vmem:[%s7 + $0x18] sm:$0xff]
    %v576 = vld [vmem:[%s7 + $0x20] sm:$0xff]
    %v577 = vld [vmem:[%s7 + $0x28] sm:$0xff]
    %v578 = vld [vmem:[%s7 + $0x30] sm:$0xff]
    %v579 = vld [vmem:[%s7 + $0x38] sm:$0xff]
    %v580 = vld [vmem:[#allocation10] sm:$0x1]
    %v582 = vlaneseq
    %v583 = vshrl.u32 %v582, 7
    %v584 = vsub.s32 0, %v583
    %v585 = vrot.slane %v580, %v584
    %vm587 = vcmask 523264
    %v589 = vsel %vm587, %v571, 0
    %591 = vmatprep.subr.mxu0 0.0
    %592 = vmatpush1.msra.mxu0 %v572
    %593 = vmatprep.subr.mxu0 0.0
    %594 = vmatpush1.msra.mxu0 %v573
    %595 = vmatprep.subr.mxu0 0.0
    %596 = vmatpush1.msra.mxu0 %v574
    %597 = vmatprep.subr.mxu0 0.0
    %598 = vmatpush1.msra.mxu0 %v575
    %599 = vmatprep.subr.mxu0 0.0
    %600 = vmatpush1.msra.mxu0 %v576
    %601 = vmatprep.subr.mxu0 0.0
    %602 = vmatpush1.msra.mxu0 %v577
    %603 = vmatprep.subr.mxu0 0.0
    %604 = vmatpush1.msra.mxu0 %v578
    %605 = vmatprep.subr.mxu0 0.0
    %606 = vmatpush1.msra.mxu0 %v579
    %607 = vmatprep.subr.mxu0 0.0
    %608 = vmatpush1.msra.mxu0 0.0
    %609 = vmatprep.subr.mxu0 0.0
    %610 = vmatpush1.msra.mxu0 0.0
    %611 = vmatprep.subr.mxu0 0.0
    %612 = vmatpush1.msra.mxu0 0.0
    %613 = vmatprep.subr.mxu0 0.0
    %614 = vmatpush1.msra.mxu0 0.0
    %615 = vmatprep.subr.mxu0 0.0
    %616 = vmatpush1.msra.mxu0 0.0
    %617 = vmatprep.subr.mxu0 0.0
    %618 = vmatpush1.msra.mxu0 0.0
    %619 = vmatprep.subr.mxu0 0.0
    %620 = vmatpush1.msra.mxu0 0.0
    %621 = vmatprep.subr.mxu0 0.0
    %622 = vmatpush1.msra.mxu0 0.0
    %623 = vmatprep.subr.mxu0 0.0
    %624 = vmatpush1.msra.mxu0 0.0
    %625 = vmatprep.subr.mxu0 0.0
    %626 = vmatpush1.msra.mxu0 0.0
    %627 = vmatprep.subr.mxu0 0.0
    %628 = vmatpush1.msra.mxu0 0.0
    %629 = vmatprep.subr.mxu0 0.0
    %630 = vmatpush1.msra.mxu0 0.0
    %631 = vmatprep.subr.mxu0 0.0
    %632 = vmatpush1.msra.mxu0 0.0
    %633 = vmatprep.subr.mxu0 0.0
    %634 = vmatpush1.msra.mxu0 0.0
    %635 = vmatprep.subr.mxu0 0.0
    %636 = vmatpush1.msra.mxu0 0.0
    %637 = vmatprep.subr.mxu0 0.0
    %638 = vmatpush1.msra.mxu0 0.0
    %639 = vmatprep.subr.mxu0 0.0
    %640 = vmatpush1.msra.mxu0 0.0
    %641 = vmatprep.subr.mxu0 0.0
    %642 = vmatpush1.msra.mxu0 0.0
    %643 = vmatprep.subr.mxu0 0.0
    %644 = vmatpush1.msra.mxu0 0.0
    %645 = vmatprep.subr.mxu0 0.0
    %646 = vmatpush1.msra.mxu0 0.0
    %647 = vmatprep.subr.mxu0 0.0
    %648 = vmatpush1.msra.mxu0 0.0
    %649 = vmatprep.subr.mxu0 0.0
    %650 = vmatpush1.msra.mxu0 0.0
    %651 = vmatprep.subr.mxu0 0.0
    %652 = vmatpush1.msra.mxu0 0.0
    %653 = vmatprep.subr.mxu0 0.0
    %654 = vmatpush1.msra.mxu0 0.0
    %655 = vmatprep.mubr.f32.mxu0 0.0
    %656 = vmatmul.mubr.f32.gmra.mrb[0].mxu0 %v589
    %v657 = vpop.f32.mrb[0].mxu0
    %v658 = vadd.f32 %v585, %v657
    %v659 = vpop.f32.mrb[0].mxu0
    %660 = vdwg.mxu0
    %v661 = vxor.u32 %v658, 2147483648
    %v662 = vmul.f32 %v661, 1.442695
    %v663 = vpow.pop %v662
    %v664 = vadd.f32 %v663, 1.0
    %v665 = vrcp.pop %v664
    %v666 = vmul.f32 1.0, %v665
    %v667 = vmul.f32 %v658, %v666
    %v668 = vld [vmem:[%s9] sm:$0x1]
    %v670 = vlaneseq
    %v671 = vshrl.u32 %v670, 7
    %v672 = vsub.s32 0, %v671
    %v673 = vrot.slane %v668, %v672
    %v675 = vmul.f32 %v667, %v673
    %vm676 = vcmask 261120
    %v677 = vsel %vm676, %v675, 0.0
    %678 = vadd.xlane.f32.xlu0 %v677
    %v679 = vpop.xlane.xlu0 %678
    %v680 = vld [vmem:[#allocation2] sm:$0x1]
    %v682 = vlaneseq
    %v683 = vshrl.u32 %v682, 7
    %v684 = vsub.s32 0, %v683
    %v685 = vrot.slane %v680, %v684
    %v687 = vadd.f32 %v679, %v685
    %689 = vrot.lane.b32.xlu0 %v687, 32
    %v690 = vpop.permute.xlu0 %689
    %v692 = vsel %vm676, %v667, %v690
    %vm693 = vcmask 269312
    %v694 = vsel %vm693, %v692, 0.0
    %695 = vst [vmem:[%s11] sm:$0xff] %v694
    // Predicated region
    $region66: #{pathnet_past_forward.1} parent=1 // pred_check
      _
    $region67: #{pathnet_past_forward.1} parent=1 // pred_check_branch
      %697 = sbr.rel (0) target = $region69
    $region68: #{pathnet_past_forward.1} parent=1 // pred_region
      _
    $region69: #{pathnet_past_forward.1} parent=1 // pred_fallthru
      _
    // Predicated region
    $region70: #{pathnet_past_forward.1} parent=1 // pred_check
      _
    $region71: #{pathnet_past_forward.1} parent=1 // pred_check_branch
      %699 = sbr.rel (0) target = $region73
    $region72: #{pathnet_past_forward.1} parent=1 // pred_region
      _
    $region73: #{pathnet_past_forward.1} parent=1 // pred_fallthru
      _
    %700 = vsyncpa [#allocation4], 1
    %701 = vsyncpa [#allocation6], 1
    %702 = vsyncpa [#allocation9], 1

</llo_original>
